<compile_context>
chip_gen: v6e
topology: v6e:2x2x1
jax: 0.10.0
libtpu: 0.0.40
codegen_flags: <defaults>
</compile_context>

<pallas_src>
import functools

import jax
import jax.numpy as jnp
from jax.experimental import pallas as pl
from jax.experimental.pallas import tpu as pltpu

_LANES = 128
_UNROLL_LIMIT = 16      # chunk counts <= this are unrolled as Python loops


def _vmem_capacity_bytes():
    """Per-core VMEM capacity; conservative (v7x) fallback if unavailable."""
    try:
        return int(pltpu.get_tpu_info().vmem_capacity_bytes)
    except Exception:
        return 64 * 1024 * 1024


def _lane_fold(x_ref, acc, n_chunks):
    """acc (C, 128) f32 += sum of n_chunks 128-lane column slices of x_ref[0].

    Pure VPU elementwise adds — no cross-lane (XLU) work per chunk.
    """
    if n_chunks <= 0:
        return acc
    if n_chunks <= _UNROLL_LIMIT:
        for k in range(n_chunks):
            acc = acc + x_ref[0, :, pl.ds(k * _LANES, _LANES)].astype(jnp.float32)
        return acc

    def body(k, a):
        off = pl.multiple_of(k * _LANES, _LANES)
        return a + x_ref[0, :, pl.ds(off, _LANES)].astype(jnp.float32)

    return jax.lax.fori_loop(0, n_chunks, body, acc)


def _mlp_gate(mean, w1_ref, b1_ref, w2_ref, b2_ref):
    """(C, 1) mean -> sigmoid(conv1x1(relu(conv1x1(mean)))) as MXU matvecs."""
    h = jnp.dot(w1_ref[...], mean, preferred_element_type=jnp.float32) + b1_ref[...]
    h = jnp.maximum(h, 0.0)
    z = jnp.dot(w2_ref[...], h, preferred_element_type=jnp.float32) + b2_ref[...]
    return jax.nn.sigmoid(z)            # (C, 1) f32


# ----------------------------------------------------------------------------
# Fused single-pass kernel: reduce + MLP + scale on a resident (C, HW) slab
# ----------------------------------------------------------------------------
def _fused_kernel(x_ref, w1_ref, b1_ref, w2_ref, b2_ref, o_ref, *, HW):
    C = x_ref.shape[1]
    n_chunks, rem = divmod(HW, _LANES)

    # Lane-wide VPU accumulation; single cross-lane reduce per batch.
    acc = jnp.zeros((C, _LANES), jnp.float32)
    acc = _lane_fold(x_ref, acc, n_chunks)
    total = jnp.sum(acc, axis=-1, keepdims=True)                      # (C, 1)
    if rem:
        tail = x_ref[0, :, pl.ds(n_chunks * _LANES, rem)].astype(jnp.float32)
        total = total + jnp.sum(tail, axis=-1, keepdims=True)

    mean = total * jnp.float32(1.0 / HW)
    g = _mlp_gate(mean, w1_ref, b1_ref, w2_ref, b2_ref)               # (C, 1)

    # Scale the same resident slab and write back (lane-dense stores).
    o_ref[0] = (x_ref[0].astype(jnp.float32) * g).astype(o_ref.dtype)


# ----------------------------------------------------------------------------
# Two-pass fallback, pass 1: tiled reduction + MLP + sigmoid -> gate (B, C, 1)
# ----------------------------------------------------------------------------
def _gate_kernel(x_ref, w1_ref, b1_ref, w2_ref, b2_ref, g_ref, acc_ref,
                 *, HW, T_hw, n_t):
    t = pl.program_id(1)

    @pl.when(t == 0)
    def _():
        acc_ref[...] = jnp.zeros_like(acc_ref)

    if n_t > 1:
        # Full (non-ragged) tiles: pure-VPU lane-wide accumulation.
        @pl.when(t < n_t - 1)
        def _():
            acc_ref[...] = _lane_fold(x_ref, acc_ref[...], T_hw // _LANES)

    # Final tile for this batch: fold only the statically-known valid columns
    # (no iota/where masking), do the single cross-lane reduce, run the MLP.
    @pl.when(t == n_t - 1)
    def _():
        last_valid = HW - (n_t - 1) * T_hw
        n_full, rem = divmod(last_valid, _LANES)
        acc = _lane_fold(x_ref, acc_ref[...], n_full)
        total = jnp.sum(acc, axis=-1, keepdims=True)                  # (C, 1)
        if rem:
            tail = x_ref[0, :, pl.ds(n_full * _LANES, rem)].astype(jnp.float32)
            total = total + jnp.sum(tail, axis=-1, keepdims=True)
        mean = total * jnp.float32(1.0 / HW)
        g_ref[0] = _mlp_gate(mean, w1_ref, b1_ref, w2_ref, b2_ref).astype(g_ref.dtype)


# ----------------------------------------------------------------------------
# Two-pass fallback, pass 2: broadcast-scale x by the precomputed gate
# ----------------------------------------------------------------------------
def _scale_kernel(x_ref, g_ref, o_ref):
    o_ref[0] = (x_ref[0].astype(jnp.float32) * g_ref[0]).astype(o_ref.dtype)


def _pick_hw_tile(C, HW, itemsize, block_budget_bytes):
    """Largest lane-dense HW tile such that one (C, T_hw) block <= budget."""
    max_elems = max(_LANES, block_budget_bytes // (C * itemsize))
    if HW <= max_elems:
        return HW                        # single full-width tile
    return max(_LANES, (max_elems // _LANES) * _LANES)


def channel_attention(x_nchw, w1, b1, w2, b2, *,
                      force_two_pass=False, block_budget_bytes=None):
    """x_nchw: (B, C, H, W). Returns (B, C, H, W) in x's dtype."""
    B, C, H, W = x_nchw.shape
    HW = H * W
    C_red = w1.shape[0]

    x_flat = x_nchw.reshape(B, C, HW)
    dt = x_flat.dtype
    w1_f = w1.astype(jnp.float32)
    w2_f = w2.astype(jnp.float32)
    b1_c = b1.reshape(C_red, 1).astype(jnp.float32)
    b2_c = b2.reshape(C, 1).astype(jnp.float32)

    cap = _vmem_capacity_bytes()
    vmem_limit = int(cap * 3 // 4)                # generous scoped limit
    weight_bytes = (2 * C * C_red + C + C_red) * 4
    slab_bytes = C * HW * dt.itemsize

    weight_specs = [
        pl.BlockSpec((C_red, C), lambda *a: (0, 0)),     # w1
        pl.BlockSpec((C_red, 1), lambda *a: (0, 0)),     # b1
        pl.BlockSpec((C, C_red), lambda *a: (0, 0)),     # w2
        pl.BlockSpec((C, 1), lambda *a: (0, 0)),         # b2
    ]

    # ---- Fused single-pass path (1R + 1W of HBM) ----------------------------
    # Footprint: double-buffered x in + double-buffered out + resident weights.
    fused_footprint = 4 * slab_bytes + weight_bytes
    if (not force_two_pass) and fused_footprint <= cap // 2:
        ce = pl.CostEstimate(
            flops=2 * B * C * HW + 4 * B * C * C_red,
            transcendentals=B * C,
            bytes_accessed=2 * B * slab_bytes + weight_bytes)
        out_flat = pl.pallas_call(
            functools.partial(_fused_kernel, HW=HW),
            out_shape=jax.ShapeDtypeStruct((B, C, HW), dt),
            grid_spec=pltpu.PrefetchScalarGridSpec(
                num_scalar_prefetch=0,
                grid=(B,),
                in_specs=[pl.BlockSpec((1, C, HW), lambda b: (b, 0, 0))] + weight_specs,
                out_specs=pl.BlockSpec((1, C, HW), lambda b: (b, 0, 0)),
            ),
            compiler_params=pltpu.CompilerParams(
                dimension_semantics=("parallel",),
                vmem_limit_bytes=vmem_limit),
            cost_estimate=ce,
        )(x_flat, w1_f, b1_c, w2_f, b2_c)
        return out_flat.reshape(B, C, H, W)

    # ---- Two-pass fallback (large per-batch slabs) ---------------------------
    if block_budget_bytes is None:
        # ~4 MiB blocks on 64 MiB (v7x) parts, ~8 MiB on 128 MiB (v5e/v6e).
        block_budget_bytes = max(512 * 1024, cap // 16)
    T_hw = _pick_hw_tile(C, HW, dt.itemsize, block_budget_bytes)
    n_t = pl.cdiv(HW, T_hw)
    assert n_t == 1 or T_hw % _LANES == 0

    # Pass 1: gate = sigmoid(MLP(mean_HW(x)))
    gate = pl.pallas_call(
        functools.partial(_gate_kernel, HW=HW, T_hw=T_hw, n_t=n_t),
        out_shape=jax.ShapeDtypeStruct((B, C, 1), jnp.float32),
        grid_spec=pltpu.PrefetchScalarGridSpec(
            num_scalar_prefetch=0,
            grid=(B, n_t),
            in_specs=[pl.BlockSpec((1, C, T_hw), lambda b, t: (b, 0, t))] + weight_specs,
            out_specs=pl.BlockSpec((1, C, 1), lambda b, t: (b, 0, 0)),
            scratch_shapes=[pltpu.VMEM((C, _LANES), jnp.float32)],
        ),
        compiler_params=pltpu.CompilerParams(
            dimension_semantics=("parallel", "arbitrary"),
            vmem_limit_bytes=vmem_limit),
        cost_estimate=pl.CostEstimate(
            flops=B * C * HW + 4 * B * C * C_red,
            transcendentals=B * C,
            bytes_accessed=B * slab_bytes + B * C * 4 + weight_bytes),
    )(x_flat, w1_f, b1_c, w2_f, b2_c)

    # Pass 2: out = x * gate (pure bandwidth, both axes parallel)
    out_flat = pl.pallas_call(
        _scale_kernel,
        out_shape=jax.ShapeDtypeStruct((B, C, HW), dt),
        grid_spec=pltpu.PrefetchScalarGridSpec(
            num_scalar_prefetch=0,
            grid=(B, n_t),
            in_specs=[
                pl.BlockSpec((1, C, T_hw), lambda b, t: (b, 0, t)),   # x tile
                pl.BlockSpec((1, C, 1), lambda b, t: (b, 0, 0)),      # gate
            ],
            out_specs=pl.BlockSpec((1, C, T_hw), lambda b, t: (b, 0, t)),
        ),
        compiler_params=pltpu.CompilerParams(
            dimension_semantics=("parallel", "parallel"),
            vmem_limit_bytes=vmem_limit),
        cost_estimate=pl.CostEstimate(
            flops=B * C * HW,
            transcendentals=0,
            bytes_accessed=2 * B * slab_bytes + B * C * 4),
    )(x_flat, gate)

    return out_flat.reshape(B, C, H, W)


def channel_attention_ref(x, w1, b1, w2, b2):
    """Pure-JAX reference matching the PyTorch module."""
    y = jnp.mean(x.astype(jnp.float32), axis=(2, 3), keepdims=True)   # (B, C, 1, 1)
    y = jnp.einsum('rc,bcij->brij', w1, y) + b1[None, :, None, None]
    y = jnp.maximum(y, 0.0)
    y = jnp.einsum('cr,brij->bcij', w2, y) + b2[None, :, None, None]
    return (x.astype(jnp.float32) * jax.nn.sigmoid(y)).astype(x.dtype)


if __name__ == "__main__":
    # Module config: in_dim = out_dim = C, reduction = 4 -> hidden = C // 4
    B, C, H, W = 2, 8, 16, 16
    reduction = 4
    C_red = C // reduction

    key = jax.random.PRNGKey(0)
    kx, k1, k2, k3, k4, kx2 = jax.random.split(key, 6)

    x = jax.random.normal(kx, (B, C, H, W), dtype=jnp.float32)
    # Deterministic synthetic parameters (Conv2d 1x1 weights squeezed to 2-D).
    w1 = jax.random.normal(k1, (C_red, C), dtype=jnp.float32) * 0.3
    b1 = jax.random.normal(k2, (C_red,), dtype=jnp.float32) * 0.1
    w2 = jax.random.normal(k3, (C, C_red), dtype=jnp.float32) * 0.3
    b2 = jax.random.normal(k4, (C,), dtype=jnp.float32) * 0.1

    # 1) Fused single-pass path (per-batch slab resident in VMEM).
    out = jax.block_until_ready(channel_attention(x, w1, b1, w2, b2))
    ref = channel_attention_ref(x, w1, b1, w2, b2)
    assert out.shape == (B, C, H, W)
    assert jnp.allclose(out, ref, atol=1e-5, rtol=1e-5), "fused path mismatch"

    # 2) Two-pass fallback path, forced with tiny tiles so the ragged final
    #    HW tile (HW = 320 -> tiles 128/128/64) is exercised at small shapes.
    H2, W2 = 16, 20
    x2 = jax.random.normal(kx2, (B, C, H2, W2), dtype=jnp.float32)
    out2 = jax.block_until_ready(
        channel_attention(x2, w1, b1, w2, b2,
                          force_two_pass=True,
                          block_budget_bytes=C * _LANES * 4))
    ref2 = channel_attention_ref(x2, w1, b1, w2, b2)
    assert jnp.allclose(out2, ref2, atol=1e-5, rtol=1e-5), "two-pass path mismatch"

    print("KERNEL_OK")
</pallas_src>

<mosaic_0001>
module attributes {stable_mosaic.version = 11 : i64} {
  func.func @_fused_kernel(%arg0: i32, %arg1: memref<1x8x256xf32, #tpu.memory_space<vmem>>, %arg2: memref<2x8xf32, #tpu.memory_space<vmem>>, %arg3: memref<2x1xf32, #tpu.memory_space<vmem>>, %arg4: memref<8x2xf32, #tpu.memory_space<vmem>>, %arg5: memref<8x1xf32, #tpu.memory_space<vmem>>, %arg6: memref<1x8x256xf32, #tpu.memory_space<vmem>>) attributes {dimension_semantics = [#tpu.dimension_semantics<parallel>], iteration_bounds = array<i64: 2>, scalar_prefetch = 0 : i64, scratch_operands = 0 : i64, tpu.core_type = #tpu.core_type<tc>, window_params = [{transform_indices = @transform_0, window_bounds = array<i64: 1, 8, 256>}, {pipeline_mode = #tpu.pipeline_mode<synchronous>, transform_indices = @transform_1, window_bounds = array<i64: 2, 8>}, {pipeline_mode = #tpu.pipeline_mode<synchronous>, transform_indices = @transform_2, window_bounds = array<i64: 2, 1>}, {pipeline_mode = #tpu.pipeline_mode<synchronous>, transform_indices = @transform_3, window_bounds = array<i64: 8, 2>}, {pipeline_mode = #tpu.pipeline_mode<synchronous>, transform_indices = @transform_4, window_bounds = array<i64: 8, 1>}, {transform_indices = @transform_5, window_bounds = array<i64: 1, 8, 256>}]} {
    %cst = arith.constant 0.000000e+00 : f32
    %0 = vector.broadcast %cst : f32 to vector<8x128xf32>
    %c0 = arith.constant 0 : index
    %c0_0 = arith.constant 0 : index
    %c0_1 = arith.constant 0 : index
    %1 = vector.load %arg1[%c0, %c0_0, %c0_1] : memref<1x8x256xf32, #tpu.memory_space<vmem>>, vector<1x8x128xf32>
    %2 = vector.shape_cast %1 : vector<1x8x128xf32> to vector<8x128xf32>
    %3 = arith.addf %0, %2 : vector<8x128xf32>
    %c0_2 = arith.constant 0 : index
    %c0_3 = arith.constant 0 : index
    %c128 = arith.constant 128 : index
    %4 = vector.load %arg1[%c0_2, %c0_3, %c128] : memref<1x8x256xf32, #tpu.memory_space<vmem>>, vector<1x8x128xf32>
    %5 = vector.shape_cast %4 : vector<1x8x128xf32> to vector<8x128xf32>
    %6 = arith.addf %3, %5 : vector<8x128xf32>
    %cst_4 = arith.constant dense<0.000000e+00> : vector<8xf32>
    %7 = vector.multi_reduction <add>, %6, %cst_4 [1] : vector<8x128xf32> to vector<8xf32>
    %8 = vector.shape_cast %7 : vector<8xf32> to vector<8x1xf32>
    %cst_5 = arith.constant 3.906250e-03 : f32
    %9 = vector.broadcast %cst_5 : f32 to vector<8x1xf32>
    %10 = arith.mulf %8, %9 : vector<8x1xf32>
    %c0_6 = arith.constant 0 : index
    %c0_7 = arith.constant 0 : index
    %11 = vector.load %arg2[%c0_6, %c0_7] : memref<2x8xf32, #tpu.memory_space<vmem>>, vector<2x8xf32>
    %cst_8 = arith.constant dense<0.000000e+00> : vector<2x1xf32>
    %12 = tpu.matmul %11, %10, %cst_8 {dimension_numbers = #tpu.dot_dimension_numbers<[1], [0], [0], [1], [0, 0, 1, 1], [], []>} : vector<2x8xf32>, vector<8x1xf32>, vector<2x1xf32> -> vector<2x1xf32>
    %c0_9 = arith.constant 0 : index
    %c0_10 = arith.constant 0 : index
    %13 = vector.load %arg3[%c0_9, %c0_10] : memref<2x1xf32, #tpu.memory_space<vmem>>, vector<2x1xf32>
    %14 = arith.addf %12, %13 : vector<2x1xf32>
    %cst_11 = arith.constant 0.000000e+00 : f32
    %15 = vector.broadcast %cst_11 : f32 to vector<2x1xf32>
    %16 = arith.maximumf %14, %15 : vector<2x1xf32>
    %c0_12 = arith.constant 0 : index
    %c0_13 = arith.constant 0 : index
    %17 = vector.load %arg4[%c0_12, %c0_13] : memref<8x2xf32, #tpu.memory_space<vmem>>, vector<8x2xf32>
    %cst_14 = arith.constant dense<0.000000e+00> : vector<8x1xf32>
    %18 = tpu.matmul %17, %16, %cst_14 {dimension_numbers = #tpu.dot_dimension_numbers<[1], [0], [0], [1], [0, 0, 1, 1], [], []>} : vector<8x2xf32>, vector<2x1xf32>, vector<8x1xf32> -> vector<8x1xf32>
    %c0_15 = arith.constant 0 : index
    %c0_16 = arith.constant 0 : index
    %19 = vector.load %arg5[%c0_15, %c0_16] : memref<8x1xf32, #tpu.memory_space<vmem>>, vector<8x1xf32>
    %20 = arith.addf %18, %19 : vector<8x1xf32>
    %21 = arith.negf %20 : vector<8x1xf32>
    %22 = math.exp %21 : vector<8x1xf32>
    %cst_17 = arith.constant 1.000000e+00 : f32
    %23 = vector.broadcast %cst_17 : f32 to vector<8x1xf32>
    %24 = arith.addf %23, %22 : vector<8x1xf32>
    %25 = arith.divf %23, %24 : vector<8x1xf32>
    %c0_18 = arith.constant 0 : index
    %c0_19 = arith.constant 0 : index
    %c0_20 = arith.constant 0 : index
    %26 = vector.load %arg1[%c0_18, %c0_19, %c0_20] : memref<1x8x256xf32, #tpu.memory_space<vmem>>, vector<1x8x256xf32>
    %27 = vector.shape_cast %26 : vector<1x8x256xf32> to vector<8x256xf32>
    %28 = vector.broadcast %25 : vector<8x1xf32> to vector<8x256xf32>
    %29 = arith.mulf %27, %28 : vector<8x256xf32>
    %c0_21 = arith.constant 0 : index
    %c0_22 = arith.constant 0 : index
    %c0_23 = arith.constant 0 : index
    %30 = vector.load %arg6[%c0_21, %c0_22, %c0_23] : memref<1x8x256xf32, #tpu.memory_space<vmem>>, vector<1x8x256xf32>
    %31 = vector.shape_cast %30 : vector<1x8x256xf32> to vector<8x256xf32>
    %32 = vector.shape_cast %29 : vector<8x256xf32> to vector<1x8x256xf32>
    tpu.vector_store %arg6[%c0_21, %c0_22, %c0_23], %32 {strides = array<i32>} : memref<1x8x256xf32, #tpu.memory_space<vmem>>, vector<1x8x256xf32>,
    return
  }
  func.func @transform_0(%arg0: i32) -> (i32, i32, i32) {
    %c0_i32 = arith.constant 0 : i32
    %c0_i32_0 = arith.constant 0 : i32
    %c0_i32_1 = arith.constant 0 : i32
    return %arg0, %c0_i32, %c0_i32_0 : i32, i32, i32
  }
  func.func @transform_1(%arg0: i32) -> (i32, i32) {
    %c0_i32 = arith.constant 0 : i32
    %c0_i32_0 = arith.constant 0 : i32
    %c0_i32_1 = arith.constant 0 : i32
    return %c0_i32, %c0_i32_0 : i32, i32
  }
  func.func @transform_2(%arg0: i32) -> (i32, i32) {
    %c0_i32 = arith.constant 0 : i32
    %c0_i32_0 = arith.constant 0 : i32
    %c0_i32_1 = arith.constant 0 : i32
    return %c0_i32, %c0_i32_0 : i32, i32
  }
  func.func @transform_3(%arg0: i32) -> (i32, i32) {
    %c0_i32 = arith.constant 0 : i32
    %c0_i32_0 = arith.constant 0 : i32
    %c0_i32_1 = arith.constant 0 : i32
    return %c0_i32, %c0_i32_0 : i32, i32
  }
  func.func @transform_4(%arg0: i32) -> (i32, i32) {
    %c0_i32 = arith.constant 0 : i32
    %c0_i32_0 = arith.constant 0 : i32
    %c0_i32_1 = arith.constant 0 : i32
    return %c0_i32, %c0_i32_0 : i32, i32
  }
  func.func @transform_5(%arg0: i32) -> (i32, i32, i32) {
    %c0_i32 = arith.constant 0 : i32
    %c0_i32_0 = arith.constant 0 : i32
    %c0_i32_1 = arith.constant 0 : i32
    return %arg0, %c0_i32, %c0_i32_0 : i32, i32, i32
  }
}

</mosaic_0001>

<llo_original>
// kernel: tpu_custom_call.1
$region0: #{tpu_custom_call.1}
  #allocation0 [shape = 'u32[]', space=smem, size = 0x4, offset = 0x4, fixed_abs, tag = 'smem constant byte address 0x4 - core index']
  #allocation1 [shape = 'u32[144,128]{1,0:T(1,128)}', space=vmem, size = 0x12000, scoped, tag = 'internal scratch']
  %s0 = inlined_call_operand.hbm [shape: f32[2,8,256], index: 0, kind: input, shape index: {}]
  %s1 = inlined_call_operand.vmem [shape: f32[2,8], index: 1, kind: input, shape index: {}]
  %s2 = inlined_call_operand.vmem [shape: f32[2,1], index: 2, kind: input, shape index: {}]
  %s3 = inlined_call_operand.vmem [shape: f32[8,2], index: 3, kind: input, shape index: {}]
  %s4 = inlined_call_operand.vmem [shape: f32[8,1], index: 4, kind: input, shape index: {}]
  %s5 = inlined_call_operand.hbm [shape: f32[2,8,256], index: 5, kind: output, shape index: {}]
  %s6 = sld [smem:[#allocation0]]
  $region57: #{tpu_custom_call.1} parent=0
    _
  %s8 = ssub.s32 1, %s6
  %s9 = scalar_select 0, %s8, %s6
  $region1: #{tpu_custom_call.1} parent=0
    #allocation2 [shape = 'u8[16384]{0}', space=vmem, size = 0x4000, scoped, tag = 'input window, operand 0']
    #allocation3 [shape = 's32[2]{0}', space=sflag, size = 0x8, scoped, tag = 'scoped memory for tpu_custom_call.1']
    #allocation4 [shape = 's32[2]{0}', space=sflag, size = 0x8, scoped, tag = 'scoped memory for tpu_custom_call.1']
    #allocation5 [shape = 'u8[16384]{0}', space=vmem, size = 0x4000, scoped, tag = 'output window, operand 0']
    %10 = vsyncpa [#allocation3], 0
    %s11 = scalar_lea.sflag [#allocation3], 1
    %12 = vsyncpa %s11, 0
    %13 = vsyncpa [#allocation4], 0
    %s14 = scalar_lea.sflag [#allocation4], 1
    %15 = vsyncpa %s14, 0
    loop: start=0, step=1, limit=4
    $region2: #{tpu_custom_call.1} parent=1 // loop_pre_header
      _
    $region3: #{tpu_custom_call.1} parent=1 // loop_header
      %s17 = sphi 0, %s21
      %p18 = scmp.ge.s32.totalorder %s17, 4
      %s27 = sphi 0, %s29
      %s30 = sphi 0, %s27
      %s31 = sphi 0, %s30
      %s47 = sphi 0, %s31
      %s51 = sphi 0, %s51
      %s53 = sphi 0, %s51
      %s54 = sphi 0, %s53
      %s68 = sphi 0, %s54
      %s72 = sphi 0, %s72
      %s74 = sphi 0, %s72
      %s75 = sphi 0, %s74
      %s89 = sphi 0, %s75
      %s93 = sphi 0, %s93
      %s95 = sphi 0, %s93
      %s96 = sphi 0, %s95
      %s110 = sphi 0, %s96
      %s114 = sphi 0, %s114
      %s116 = sphi 0, %s114
      %s117 = sphi 0, %s116
      %s131 = sphi 0, %s117
      %s137 = sphi 0, %s139
      %s140 = sphi 0, %s137
      %s141 = sphi 0, %s140
      %s157 = sphi 0, %s141
    $region4: #{tpu_custom_call.1} parent=1 // loop_header_branch
      %20 = sbr.rel (%p18) target = $region8
    $region5: #{tpu_custom_call.1} parent=1 // loop_body
      %s22 = ssub.s32 %s17, 1
      %s23 = ssub.s32 %s17, 2
      %s24 = sadd.s32 %s17, 1
      %s25 = ssub.s32 %s17, %s24
      %p26 = scmp.eq.s32.totalorder %s25, 0
      %s28 = sadd.s32 %s27, 1
      %s29 = scalar_select %p26, %s27, %s28
      %p32 = pneg %p26
      %p33 = scmp.eq.s32.totalorder %s17, 1
      %p34 = por %p32, %p33
      %p35 = scmp.ne.s32.totalorder %s27, %s30
      %p36 = scmp.eq.s32.totalorder %s17, 0
      %p37 = por %p35, %p36
      %p38 = scmp.ne.s32.totalorder %s27, %s30
      %p39 = scmp.eq.s32.totalorder %s22, 1
      %p40 = por %p38, %p39
      %p41 = scmp.ne.s32.totalorder %s30, %s31
      %p42 = scmp.eq.s32.totalorder %s22, 0
      %p43 = por %p41, %p42
      %p44 = scmp.ne.s32.totalorder %s30, %s31
      %p45 = scmp.eq.s32.totalorder %s23, 1
      %p46 = por %p44, %p45
      %p48 = scmp.ne.s32.totalorder %s31, %s47
      %p49 = scmp.eq.s32.totalorder %s23, 0
      %p50 = por %p48, %p49
      %s52 = sadd.s32 %s51, 1
      %p55 = scmp.eq.s32.totalorder %s17, 1
      %p56 = scmp.ne.s32.totalorder %s51, %s53
      %p57 = scmp.eq.s32.totalorder %s17, 0
      %p58 = por %p56, %p57
      %p59 = scmp.ne.s32.totalorder %s51, %s53
      %p60 = scmp.eq.s32.totalorder %s22, 1
      %p61 = por %p59, %p60
      %p62 = scmp.ne.s32.totalorder %s53, %s54
      %p63 = scmp.eq.s32.totalorder %s22, 0
      %p64 = por %p62, %p63
      %p65 = scmp.ne.s32.totalorder %s53, %s54
      %p66 = scmp.eq.s32.totalorder %s23, 1
      %p67 = por %p65, %p66
      %p69 = scmp.ne.s32.totalorder %s54, %s68
      %p70 = scmp.eq.s32.totalorder %s23, 0
      %p71 = por %p69, %p70
      %s73 = sadd.s32 %s72, 1
      %p76 = scmp.eq.s32.totalorder %s17, 1
      %p77 = scmp.ne.s32.totalorder %s72, %s74
      %p78 = scmp.eq.s32.totalorder %s17, 0
      %p79 = por %p77, %p78
      %p80 = scmp.ne.s32.totalorder %s72, %s74
      %p81 = scmp.eq.s32.totalorder %s22, 1
      %p82 = por %p80, %p81
      %p83 = scmp.ne.s32.totalorder %s74, %s75
      %p84 = scmp.eq.s32.totalorder %s22, 0
      %p85 = por %p83, %p84
      %p86 = scmp.ne.s32.totalorder %s74, %s75
      %p87 = scmp.eq.s32.totalorder %s23, 1
      %p88 = por %p86, %p87
      %p90 = scmp.ne.s32.totalorder %s75, %s89
      %p91 = scmp.eq.s32.totalorder %s23, 0
      %p92 = por %p90, %p91
      %s94 = sadd.s32 %s93, 1
      %p97 = scmp.eq.s32.totalorder %s17, 1
      %p98 = scmp.ne.s32.totalorder %s93, %s95
      %p99 = scmp.eq.s32.totalorder %s17, 0
      %p100 = por %p98, %p99
      %p101 = scmp.ne.s32.totalorder %s93, %s95
      %p102 = scmp.eq.s32.totalorder %s22, 1
      %p103 = por %p101, %p102
      %p104 = scmp.ne.s32.totalorder %s95, %s96
      %p105 = scmp.eq.s32.totalorder %s22, 0
      %p106 = por %p104, %p105
      %p107 = scmp.ne.s32.totalorder %s95, %s96
      %p108 = scmp.eq.s32.totalorder %s23, 1
      %p109 = por %p107, %p108
      %p111 = scmp.ne.s32.totalorder %s96, %s110
      %p112 = scmp.eq.s32.totalorder %s23, 0
      %p113 = por %p111, %p112
      %s115 = sadd.s32 %s114, 1
      %p118 = scmp.eq.s32.totalorder %s17, 1
      %p119 = scmp.ne.s32.totalorder %s114, %s116
      %p120 = scmp.eq.s32.totalorder %s17, 0
      %p121 = por %p119, %p120
      %p122 = scmp.ne.s32.totalorder %s114, %s116
      %p123 = scmp.eq.s32.totalorder %s22, 1
      %p124 = por %p122, %p123
      %p125 = scmp.ne.s32.totalorder %s116, %s117
      %p126 = scmp.eq.s32.totalorder %s22, 0
      %p127 = por %p125, %p126
      %p128 = scmp.ne.s32.totalorder %s116, %s117
      %p129 = scmp.eq.s32.totalorder %s23, 1
      %p130 = por %p128, %p129
      %p132 = scmp.ne.s32.totalorder %s117, %s131
      %p133 = scmp.eq.s32.totalorder %s23, 0
      %p134 = por %p132, %p133
      %s135 = ssub.s32 %s17, %s24
      %p136 = scmp.eq.s32.totalorder %s135, 0
      %s138 = sadd.s32 %s137, 1
      %s139 = scalar_select %p136, %s137, %s138
      %p142 = pneg %p136
      %p143 = scmp.eq.s32.totalorder %s17, 1
      %p144 = por %p142, %p143
      %p145 = scmp.ne.s32.totalorder %s137, %s140
      %p146 = scmp.eq.s32.totalorder %s17, 0
      %p147 = por %p145, %p146
      %p148 = scmp.ne.s32.totalorder %s137, %s140
      %p149 = scmp.eq.s32.totalorder %s22, 1
      %p150 = por %p148, %p149
      %p151 = scmp.ne.s32.totalorder %s140, %s141
      %p152 = scmp.eq.s32.totalorder %s22, 0
      %p153 = por %p151, %p152
      %p154 = scmp.ne.s32.totalorder %s140, %s141
      %p155 = scmp.eq.s32.totalorder %s23, 1
      %p156 = por %p154, %p155
      %p158 = scmp.ne.s32.totalorder %s141, %s157
      %p159 = scmp.eq.s32.totalorder %s23, 0
      %p160 = por %p158, %p159
      %p161 = scmp.le.s32.totalorder 1, %s17
      %p162 = scmp.lt.s32.totalorder %s17, 3
      %p163 = pnand %p161, %p162
      %p164 = pneg %p163
      // Predicated region
      $region9: #{tpu_custom_call.1} parent=5 // pred_check
        _
      $region10: #{tpu_custom_call.1} parent=5 // pred_check_branch
        %166 = sbr.rel (%p163) target = $region12
      $region11: #{tpu_custom_call.1} parent=5 // pred_region
        %s167 = ssub.s32 %s17, 1
        // Predicated region
        $region13: #{tpu_custom_call.1} parent=11 // pred_check
          %p168 = pneg %p64
        $region14: #{tpu_custom_call.1} parent=11 // pred_check_branch
          %170 = sbr.rel (%p168) target = $region16
        $region15: #{tpu_custom_call.1} parent=11 // pred_region
          _
        $region16: #{tpu_custom_call.1} parent=11 // pred_fallthru
          _
        // Predicated region
        $region17: #{tpu_custom_call.1} parent=11 // pred_check
          %p171 = pneg %p85
        $region18: #{tpu_custom_call.1} parent=11 // pred_check_branch
          %173 = sbr.rel (%p171) target = $region20
        $region19: #{tpu_custom_call.1} parent=11 // pred_region
          _
        $region20: #{tpu_custom_call.1} parent=11 // pred_fallthru
          _
        // Predicated region
        $region21: #{tpu_custom_call.1} parent=11 // pred_check
          %p174 = pneg %p106
        $region22: #{tpu_custom_call.1} parent=11 // pred_check_branch
          %176 = sbr.rel (%p174) target = $region24
        $region23: #{tpu_custom_call.1} parent=11 // pred_region
          _
        $region24: #{tpu_custom_call.1} parent=11 // pred_fallthru
          _
        // Predicated region
        $region25: #{tpu_custom_call.1} parent=11 // pred_check
          %p177 = pneg %p127
        $region26: #{tpu_custom_call.1} parent=11 // pred_check_branch
          %179 = sbr.rel (%p177) target = $region28
        $region27: #{tpu_custom_call.1} parent=11 // pred_region
          _
        $region28: #{tpu_custom_call.1} parent=11 // pred_fallthru
          _
      $region12: #{tpu_custom_call.1} parent=5 // pred_fallthru
        _
      %p180 = scmp.lt.s32.totalorder %s17, 2
      // Predicated region
      $region29: #{tpu_custom_call.1} parent=5 // pred_check
        %p181 = pneg %p180
      $region30: #{tpu_custom_call.1} parent=5 // pred_check_branch
        %183 = sbr.rel (%p181) target = $region32
      $region31: #{tpu_custom_call.1} parent=5 // pred_region
        // Predicated region
        $region33: #{tpu_custom_call.1} parent=31 // pred_check
          %p184 = pneg %p37
        $region34: #{tpu_custom_call.1} parent=31 // pred_check_branch
          %186 = sbr.rel (%p184) target = $region36
        $region35: #{tpu_custom_call.1} parent=31 // pred_region
          %s187 = sand.u32 %s27, 1
          %s188 = scalar_lea.sflag [#allocation3], %s187
          %s189 = sand.u32 %s27, 1
          %s190 = smul.addr %s189, 16
          %s191 = scalar_lea.vmem [#allocation2], %s190
          %s193 = ssub.s32 256, 256
          %194 = vsyncadd %s188, %s193
          %s195 = smul.addr %s17, 2
          %s196 = smul.addr %s195, 128
          %s197 = scalar_lea.hbm %s0, %s196
          %s199 = sshll.u32 %s191, 4
          %s200 = int_to_ptr.vmem [resolvable:$true] %s199
          %202 = dma.hbm_to_vmem [thread:$0]  %s197, 256, %s200, %s188
        $region36: #{tpu_custom_call.1} parent=31 // pred_fallthru
          _
      $region32: #{tpu_custom_call.1} parent=5 // pred_fallthru
        _
      %p203 = scmp.le.s32.totalorder 1, %s17
      %p204 = scmp.lt.s32.totalorder %s17, 3
      %p205 = pnand %p203, %p204
      %p206 = pneg %p205
      // Predicated region
      $region37: #{tpu_custom_call.1} parent=5 // pred_check
        _
      $region38: #{tpu_custom_call.1} parent=5 // pred_check_branch
        %208 = sbr.rel (%p205) target = $region40
      $region39: #{tpu_custom_call.1} parent=5 // pred_region
        %s209 = ssub.s32 %s17, 1
        %s210 = sand.u32 %s30, 1
        %s211 = scalar_lea.sflag [#allocation3], %s210
        %s212 = sand.u32 %s30, 1
        %s213 = smul.addr %s212, 16
        %s214 = scalar_lea.vmem [#allocation2], %s213
        // Predicated region
        $region41: #{tpu_custom_call.1} parent=39 // pred_check
          %p215 = pneg %p43
        $region42: #{tpu_custom_call.1} parent=39 // pred_check_branch
          %217 = sbr.rel (%p215) target = $region44
        $region43: #{tpu_custom_call.1} parent=39 // pred_region
          %218 = dma.done %s211, 256
        $region44: #{tpu_custom_call.1} parent=39 // pred_fallthru
          _
        %s219 = sand.u32 %s30, 1
        %s220 = scalar_lea.sflag [#allocation3], %s219
        %s221 = sand.u32 %s30, 1
        %s222 = smul.addr %s221, 16
        %s223 = scalar_lea.vmem [#allocation2], %s222
        %p224 = pneg %p43
        %p225 = pneg %p40
        %p226 = pneg %p64
        %p227 = pneg %p61
        %p228 = pneg %p85
        %p229 = pneg %p82
        %p230 = pneg %p106
        %p231 = pneg %p103
        %p232 = pneg %p127
        %p233 = pneg %p124
        %p234 = pneg %p153
        %p235 = pneg %p150
        %s236 = sand.u32 %s140, 1
        %s237 = scalar_lea.sflag [#allocation4], %s236
        %s238 = sand.u32 %s140, 1
        %s239 = smul.addr %s238, 16
        %s240 = scalar_lea.vmem [#allocation5], %s239
        %v241 = vld [vmem:[%s214] sm:$0xff]
        %v242 = vadd.f32 %v241, 0.0
        %v243 = vld [vmem:[%s214 + $0x8] sm:$0xff]
        %v244 = vadd.f32 %v242, %v243
        %245 = vadd.xlane.f32.xlu0 %v244
        %v246 = vpop.xlane.xlu0 %245
        %v247 = vmul.f32 %v246, 0.00390625
        %v248 = vld [vmem:[%s1] sm:$0x3]
        %v249 = vld [vmem:[%s2] sm:$0x3]
        %vm250 = vcmask 64512
        %v252 = vsel %vm250, %v248, 0
        %254 = vmatprep.subr.mxu0 0.0
        %255 = vmatpush1.msra.mxu0 0.0
        %256 = vmatprep.subr.mxu0 0.0
        %257 = vmatpush1.msra.mxu0 0.0
        %258 = vmatprep.subr.mxu0 0.0
        %259 = vmatpush1.msra.mxu0 0.0
        %260 = vmatprep.subr.mxu0 0.0
        %261 = vmatpush1.msra.mxu0 0.0
        %262 = vmatprep.subr.mxu0 0.0
        %263 = vmatpush1.msra.mxu0 0.0
        %264 = vmatprep.subr.mxu0 0.0
        %265 = vmatpush1.msra.mxu0 0.0
        %266 = vmatprep.subr.mxu0 0.0
        %267 = vmatpush1.msra.mxu0 0.0
        %268 = vmatprep.subr.mxu0 0.0
        %269 = vmatpush1.msra.mxu0 0.0
        %270 = vmatprep.subr.mxu0 0.0
        %271 = vmatpush1.msra.mxu0 0.0
        %272 = vmatprep.subr.mxu0 0.0
        %273 = vmatpush1.msra.mxu0 0.0
        %274 = vmatprep.subr.mxu0 0.0
        %275 = vmatpush1.msra.mxu0 0.0
        %276 = vmatprep.subr.mxu0 0.0
        %277 = vmatpush1.msra.mxu0 0.0
        %278 = vmatprep.subr.mxu0 0.0
        %279 = vmatpush1.msra.mxu0 0.0
        %280 = vmatprep.subr.mxu0 0.0
        %281 = vmatpush1.msra.mxu0 0.0
        %282 = vmatprep.subr.mxu0 0.0
        %283 = vmatpush1.msra.mxu0 0.0
        %284 = vmatprep.subr.mxu0 0.0
        %285 = vmatpush1.msra.mxu0 %v247
        %286 = vmatprep.subr.mxu0 0.0
        %287 = vmatpush2.msra.mxu0 0.0
        %288 = vmatprep.subr.mxu0 0.0
        %289 = vmatpush2.msra.mxu0 0.0
        %290 = vmatprep.subr.mxu0 0.0
        %291 = vmatpush2.msra.mxu0 0.0
        %292 = vmatprep.subr.mxu0 0.0
        %293 = vmatpush2.msra.mxu0 0.0
        %294 = vmatprep.subr.mxu0 0.0
        %295 = vmatpush2.msra.mxu0 0.0
        %296 = vmatprep.subr.mxu0 0.0
        %297 = vmatpush2.msra.mxu0 0.0
        %298 = vmatprep.subr.mxu0 0.0
        %299 = vmatpush2.msra.mxu0 0.0
        %300 = vmatprep.subr.mxu0 0.0
        %301 = vmatpush2.msra.mxu0 0.0
        %302 = vmatprep.subr.mxu0 0.0
        %303 = vmatpush2.msra.mxu0 0.0
        %304 = vmatprep.subr.mxu0 0.0
        %305 = vmatpush2.msra.mxu0 0.0
        %306 = vmatprep.subr.mxu0 0.0
        %307 = vmatpush2.msra.mxu0 0.0
        %308 = vmatprep.subr.mxu0 0.0
        %309 = vmatpush2.msra.mxu0 0.0
        %310 = vmatprep.subr.mxu0 0.0
        %311 = vmatpush2.msra.mxu0 0.0
        %312 = vmatprep.subr.mxu0 0.0
        %313 = vmatpush2.msra.mxu0 0.0
        %314 = vmatprep.subr.mxu0 0.0
        %315 = vmatpush2.msra.mxu0 0.0
        %316 = vmatprep.subr.mxu0 0.0
        %317 = vmatpush2.msra.mxu0 0.0
        %318 = vmatprep.mubr.f32.mxu0 0.0
        %319 = vmatmul.mubr.f32.gmra.mxu0 %v252
        %v320 = vpop.f32.mrf.mxu0
        %v321 = vadd.f32 %v249, %v320
        %v322 = vpop.f32.mrf.mxu0
        %323 = vdwg.mxu0
        %v324 = vmax.f32 %v321, 0.0
        %v325 = vld [vmem:[%s3] sm:$0xff]
        %v326 = vld [vmem:[%s4] sm:$0xff]
        %vm327 = vcmask 15360
        %v329 = vsel %vm327, %v325, 0
        %vm331 = vcmask 1041408
        %v333 = vsel %vm331, %v324, 0
        %335 = vmatprep.subr.mxu0 0.0
        %336 = vmatpush1.msra.mxu0 0.0
        %337 = vmatprep.subr.mxu0 0.0
        %338 = vmatpush1.msra.mxu0 0.0
        %339 = vmatprep.subr.mxu0 0.0
        %340 = vmatpush1.msra.mxu0 0.0
        %341 = vmatprep.subr.mxu0 0.0
        %342 = vmatpush1.msra.mxu0 0.0
        %343 = vmatprep.subr.mxu0 0.0
        %344 = vmatpush1.msra.mxu0 0.0
        %345 = vmatprep.subr.mxu0 0.0
        %346 = vmatpush1.msra.mxu0 0.0
        %347 = vmatprep.subr.mxu0 0.0
        %348 = vmatpush1.msra.mxu0 0.0
        %349 = vmatprep.subr.mxu0 0.0
        %350 = vmatpush1.msra.mxu0 0.0
        %351 = vmatprep.subr.mxu0 0.0
        %352 = vmatpush1.msra.mxu0 0.0
        %353 = vmatprep.subr.mxu0 0.0
        %354 = vmatpush1.msra.mxu0 0.0
        %355 = vmatprep.subr.mxu0 0.0
        %356 = vmatpush1.msra.mxu0 0.0
        %357 = vmatprep.subr.mxu0 0.0
        %358 = vmatpush1.msra.mxu0 0.0
        %359 = vmatprep.subr.mxu0 0.0
        %360 = vmatpush1.msra.mxu0 0.0
        %361 = vmatprep.subr.mxu0 0.0
        %362 = vmatpush1.msra.mxu0 0.0
        %363 = vmatprep.subr.mxu0 0.0
        %364 = vmatpush1.msra.mxu0 0.0
        %365 = vmatprep.subr.mxu0 0.0
        %366 = vmatpush1.msra.mxu0 %v333
        %367 = vmatprep.subr.mxu0 0.0
        %368 = vmatpush2.msra.mxu0 0.0
        %369 = vmatprep.subr.mxu0 0.0
        %370 = vmatpush2.msra.mxu0 0.0
        %371 = vmatprep.subr.mxu0 0.0
        %372 = vmatpush2.msra.mxu0 0.0
        %373 = vmatprep.subr.mxu0 0.0
        %374 = vmatpush2.msra.mxu0 0.0
        %375 = vmatprep.subr.mxu0 0.0
        %376 = vmatpush2.msra.mxu0 0.0
        %377 = vmatprep.subr.mxu0 0.0
        %378 = vmatpush2.msra.mxu0 0.0
        %379 = vmatprep.subr.mxu0 0.0
        %380 = vmatpush2.msra.mxu0 0.0
        %381 = vmatprep.subr.mxu0 0.0
        %382 = vmatpush2.msra.mxu0 0.0
        %383 = vmatprep.subr.mxu0 0.0
        %384 = vmatpush2.msra.mxu0 0.0
        %385 = vmatprep.subr.mxu0 0.0
        %386 = vmatpush2.msra.mxu0 0.0
        %387 = vmatprep.subr.mxu0 0.0
        %388 = vmatpush2.msra.mxu0 0.0
        %389 = vmatprep.subr.mxu0 0.0
        %390 = vmatpush2.msra.mxu0 0.0
        %391 = vmatprep.subr.mxu0 0.0
        %392 = vmatpush2.msra.mxu0 0.0
        %393 = vmatprep.subr.mxu0 0.0
        %394 = vmatpush2.msra.mxu0 0.0
        %395 = vmatprep.subr.mxu0 0.0
        %396 = vmatpush2.msra.mxu0 0.0
        %397 = vmatprep.subr.mxu0 0.0
        %398 = vmatpush2.msra.mxu0 0.0
        %399 = vmatprep.mubr.f32.mxu0 0.0
        %400 = vmatmul.mubr.f32.gmra.mxu0 %v329
        %v401 = vpop.f32.mrf.mxu0
        %v402 = vadd.f32 %v326, %v401
        %v403 = vpop.f32.mrf.mxu0
        %404 = vdwg.mxu0
        %v405 = vxor.u32 %v402, 2147483648
        %v406 = vmul.f32 %v405, 1.442695
        %v407 = vpow.pop %v406
        %v408 = vadd.f32 %v407, 1.0
        %v409 = vrcp.pop %v408
        %v410 = vmul.f32 1.0, %v409
        %v411 = vld [vmem:[%s214] sm:$0xff]
        %413 = vset.pattern.permute.xlu0 0
        %414 = vperm.xlu0 %413, %v410
        %v415 = vpop.permute.xlu0 %414
        %v417 = vmul.f32 %v411, %v415
        %v418 = vmul.f32 %v243, %v415
        %419 = vst [vmem:[%s240] sm:$0xff] %v417
        %420 = vst [vmem:[%s240 + $0x8] sm:$0xff] %v418
        %s421 = sand.u32 %s140, 1
        %s422 = scalar_lea.sflag [#allocation4], %s421
        %s423 = sand.u32 %s140, 1
        %s424 = smul.addr %s423, 16
        %s425 = scalar_lea.vmem [#allocation5], %s424
        // Predicated region
        $region45: #{tpu_custom_call.1} parent=39 // pred_check
          %p426 = pneg %p150
        $region46: #{tpu_custom_call.1} parent=39 // pred_check_branch
          %428 = sbr.rel (%p426) target = $region48
        $region47: #{tpu_custom_call.1} parent=39 // pred_region
          %s430 = ssub.s32 256, 256
          %431 = vsyncadd %s422, %s430
          %s432 = smul.addr %s22, 2
          %s433 = smul.addr %s432, 128
          %s434 = scalar_lea.hbm %s5, %s433
          %s436 = sshll.u32 %s425, 4
          %s437 = int_to_ptr.vmem [resolvable:$true] %s436
          %439 = dma.vmem_to_hbm [thread:$0]  %s437, 256, %s434, %s422
        $region48: #{tpu_custom_call.1} parent=39 // pred_fallthru
          _
      $region40: #{tpu_custom_call.1} parent=5 // pred_fallthru
        _
      %p440 = scmp.le.s32.totalorder 2, %s17
      // Predicated region
      $region49: #{tpu_custom_call.1} parent=5 // pred_check
        %p441 = pneg %p440
      $region50: #{tpu_custom_call.1} parent=5 // pred_check_branch
        %443 = sbr.rel (%p441) target = $region52
      $region51: #{tpu_custom_call.1} parent=5 // pred_region
        %s444 = ssub.s32 %s17, 2
        // Predicated region
        $region53: #{tpu_custom_call.1} parent=51 // pred_check
          %p445 = pneg %p156
        $region54: #{tpu_custom_call.1} parent=51 // pred_check_branch
          %447 = sbr.rel (%p445) target = $region56
        $region55: #{tpu_custom_call.1} parent=51 // pred_region
          %s448 = sand.u32 %s141, 1
          %s449 = scalar_lea.sflag [#allocation4], %s448
          %s450 = sand.u32 %s141, 1
          %s451 = smul.addr %s450, 16
          %s452 = scalar_lea.vmem [#allocation5], %s451
          %453 = dma.done %s449, 256
        $region56: #{tpu_custom_call.1} parent=51 // pred_fallthru
          _
      $region52: #{tpu_custom_call.1} parent=5 // pred_fallthru
        _
    $region6: #{tpu_custom_call.1} parent=1 // loop_footer
      %s21 = sadd.s32 1, %s17
    $region7: #{tpu_custom_call.1} parent=1 // loop_footer_branch
      %16 = sbr.rel target = $region3
    $region8: #{tpu_custom_call.1} parent=1 // loop_exit
      _
    %454 = vsyncpa [#allocation3], 1
    %s455 = scalar_lea.sflag [#allocation3], 1
    %456 = vsyncpa %s455, 1
    %457 = vsyncpa [#allocation4], 1
    %s458 = scalar_lea.sflag [#allocation4], 1
    %459 = vsyncpa %s458, 1

</llo_original>
